<compile_context>
chip_gen: v5e
topology: v5e:2x2
jax: 0.10.0
libtpu: 0.0.40
codegen_flags: <defaults>
</compile_context>

<pallas_src>
import math
import functools

import jax
import jax.numpy as jnp
from jax.experimental import pallas as pl
from jax.experimental.pallas import tpu as pltpu


def _round_up(x, m):
    return ((x + m - 1) // m) * m


def _to_mxu_dtype(x):
    # f32 activations are cast to bf16 on the VPU so the MXU does single-pass
    # bf16 matmuls (f32 matmul is emulated in multiple passes on v5e/v6e/v7x).
    if x.dtype == jnp.float32:
        return x.astype(jnp.bfloat16)
    return x


# ---------------------------------------------------------------------------
# Fast path: whole weight resident in VMEM (constant index_map), grid = (M,)
# ---------------------------------------------------------------------------
def _linear_resident_kernel(x_ref, wt_ref, b_ref, o_ref):
    # x_ref: (tm, K), wt_ref: (K, Np) bf16, b_ref: (1, Np) f32, o_ref: (tm, Np)
    acc = jnp.dot(_to_mxu_dtype(x_ref[...]), wt_ref[...],
                  preferred_element_type=jnp.float32)
    o_ref[...] = (acc + b_ref[...]).astype(o_ref.dtype)


# ---------------------------------------------------------------------------
# Tiled fallback (large weights), f32 output: accumulate directly into o_ref
# (output block is resident across the K axis), bias folded into the k==0 init.
# ---------------------------------------------------------------------------
def _linear_tiled_kernel_f32(x_ref, wt_ref, b_ref, o_ref):
    k = pl.program_id(2)

    @pl.when(k == 0)
    def _():
        o_ref[...] = jnp.broadcast_to(b_ref[...], o_ref.shape)

    o_ref[...] += jnp.dot(_to_mxu_dtype(x_ref[...]), wt_ref[...],
                          preferred_element_type=jnp.float32)


# Tiled fallback for non-f32 outputs: f32 VMEM accumulator + epilogue cast.
def _linear_tiled_kernel_acc(x_ref, wt_ref, b_ref, o_ref, acc_ref):
    k = pl.program_id(2)

    @pl.when(k == 0)
    def _():
        acc_ref[...] = jnp.broadcast_to(b_ref[...], acc_ref.shape)

    acc_ref[...] += jnp.dot(_to_mxu_dtype(x_ref[...]), wt_ref[...],
                            preferred_element_type=jnp.float32)

    @pl.when(k == pl.num_programs(2) - 1)
    def _():
        o_ref[...] = acc_ref[...].astype(o_ref.dtype)


def decoder_forward(data, weight_t_p, bias_p, *, n_out,
                    tm_max=512, tk_max=512, tn_max=512,
                    resident_weight_bytes=4 * 1024 * 1024):
    """Equivalent of F.linear(data, weight, bias).

    data:       (..., d_hidden)
    weight_t_p: (d_hidden, Np)  weight.T, lane-dense padded + bf16, built at init
    bias_p:     (1, Np)         f32, padded at init
    n_out:      true d_data (static); output is (..., n_out)
    """
    K, Np = weight_t_p.shape
    assert data.shape[-1] == K
    lead = data.shape[:-1]
    m = int(math.prod(lead)) if lead else 1

    # ---- M tiling: ensure >=2 blocks when possible so both v7x TCs get work.
    tm = min(tm_max, _round_up(m, 8))
    if m > 8 and _round_up(m, tm) // tm < 2:
        tm = _round_up(-(-m // 2), 8)
    Mp = _round_up(m, tm)

    x2d = data.reshape(m, K)
    if Mp != m:
        x2d = jnp.pad(x2d, ((0, Mp - m), (0, 0)))   # K is never padded

    out_dtype = data.dtype
    x_itemsize = jnp.dtype(x2d.dtype).itemsize
    w_itemsize = jnp.dtype(weight_t_p.dtype).itemsize
    o_itemsize = jnp.dtype(out_dtype).itemsize
    weight_bytes = K * Np * w_itemsize

    # Double-buffered x/out blocks + single weight/bias copy.
    resident_vmem = (2 * tm * K * x_itemsize + 2 * tm * Np * o_itemsize
                     + weight_bytes + Np * 4)

    if weight_bytes <= resident_weight_bytes and resident_vmem <= 12 * 1024 * 1024:
        # -------- fast path: weight resident, single grid axis over M --------
        out2d = pl.pallas_call(
            _linear_resident_kernel,
            out_shape=jax.ShapeDtypeStruct((Mp, Np), out_dtype),
            grid=(Mp // tm,),
            in_specs=[
                pl.BlockSpec((tm, K), lambda i: (i, 0)),    # activations: stream
                pl.BlockSpec((K, Np), lambda i: (0, 0)),    # weight: fetched once
                pl.BlockSpec((1, Np), lambda i: (0, 0)),    # bias:   fetched once
            ],
            out_specs=pl.BlockSpec((tm, Np), lambda i: (i, 0)),
            compiler_params=pltpu.CompilerParams(
                dimension_semantics=("parallel",)),
            cost_estimate=pl.CostEstimate(
                flops=2 * Mp * K * Np,
                transcendentals=0,
                bytes_accessed=(Mp * K * x_itemsize + weight_bytes + Np * 4
                                + Mp * Np * o_itemsize)),
        )(x2d, weight_t_p, bias_p)
    else:
        # -------- tiled fallback for large weights --------
        if K <= tk_max:
            tk, Kp = K, K                       # full-K block, no padding
        elif K % 128 == 0:
            tk = min(tk_max, K)
            while K % tk != 0:
                tk -= 128
            Kp = K
        else:
            tk = tk_max                         # tk_max is a multiple of 128
            Kp = _round_up(K, tk)

        # tn: largest multiple of 128 <= tn_max that divides the pre-padded Np.
        tn = min(tn_max, Np)
        while Np % tn != 0:
            tn -= 128

        wt = weight_t_p
        if Kp != K:
            # TODO(synk): for very large weights, pre-pad K at init as well to
            # avoid this per-call pad on the fallback path.
            x2d = jnp.pad(x2d, ((0, 0), (0, Kp - K)))
            wt = jnp.pad(wt, ((0, Kp - K), (0, 0)))

        grid = (Mp // tm, Np // tn, Kp // tk)
        use_f32_direct = out_dtype == jnp.float32
        kernel = _linear_tiled_kernel_f32 if use_f32_direct else _linear_tiled_kernel_acc
        scratch = [] if use_f32_direct else [pltpu.VMEM((tm, tn), jnp.float32)]

        out2d = pl.pallas_call(
            kernel,
            out_shape=jax.ShapeDtypeStruct((Mp, Np), out_dtype),
            grid=grid,
            in_specs=[
                pl.BlockSpec((tm, tk), lambda i, j, k: (i, k)),
                pl.BlockSpec((tk, tn), lambda i, j, k: (k, j)),
                pl.BlockSpec((1, tn), lambda i, j, k: (0, j)),
            ],
            out_specs=pl.BlockSpec((tm, tn), lambda i, j, k: (i, j)),
            scratch_shapes=scratch,
            compiler_params=pltpu.CompilerParams(
                dimension_semantics=("parallel", "parallel", "arbitrary")),
            cost_estimate=pl.CostEstimate(
                flops=2 * Mp * Kp * Np,
                transcendentals=0,
                bytes_accessed=(Mp * Kp * x_itemsize + Kp * Np * w_itemsize
                                + Np * 4 + Mp * Np * o_itemsize)),
        )(x2d, wt, bias_p)

    out2d = out2d[:m, :n_out]
    return out2d.reshape(*lead, n_out)


def init_params(key, d_data, d_hidden, dtype=jnp.float32,
                compute_dtype=jnp.bfloat16):
    """xavier_uniform_ weight (d_data, d_hidden), zero bias — PyTorch semantics.

    Also builds the kernel-side params ONCE: weight transposed, N padded to a
    multiple of 128 (lane-dense stores), cast to the MXU compute dtype; bias
    padded to (1, Np) f32.
    """
    bound = math.sqrt(6.0 / (d_data + d_hidden))
    weight = jax.random.uniform(key, (d_data, d_hidden), dtype=dtype,
                                minval=-bound, maxval=bound)
    bias = jnp.zeros((d_data,), dtype=dtype)

    n_pad = _round_up(d_data, 128)
    weight_t_p = jnp.zeros((d_hidden, n_pad), dtype=compute_dtype)
    weight_t_p = weight_t_p.at[:, :d_data].set(weight.T.astype(compute_dtype))
    bias_p = jnp.zeros((1, n_pad), dtype=jnp.float32)
    bias_p = bias_p.at[0, :d_data].set(bias.astype(jnp.float32))
    return weight, bias, weight_t_p, bias_p


if __name__ == "__main__":
    key = jax.random.PRNGKey(0)
    k_w, k_x = jax.random.split(key)

    d_data, d_hidden = 4, 32
    batch, seq = 2, 8

    weight, bias, weight_t_p, bias_p = init_params(k_w, d_data, d_hidden)
    data = jax.random.normal(k_x, (batch, seq, d_hidden), dtype=jnp.float32)

    # Fast (weight-resident) path — the common gluonts decoder case.
    fwd = jax.jit(functools.partial(decoder_forward, n_out=d_data))
    out = fwd(data, weight_t_p, bias_p)
    jax.block_until_ready(out)

    # Also exercise the tiled fallback path (forced by disabling residency).
    fwd_tiled = jax.jit(functools.partial(decoder_forward, n_out=d_data,
                                          resident_weight_bytes=0))
    out_tiled = fwd_tiled(data, weight_t_p, bias_p)
    jax.block_until_ready(out_tiled)

    assert out.shape == (batch, seq, d_data)
    assert out.dtype == data.dtype

    # Reference at matched precision (bf16 inputs, f32 accumulate).
    x_bf = data.astype(jnp.bfloat16).astype(jnp.float32)
    w_bf = weight.astype(jnp.bfloat16).astype(jnp.float32)
    ref_bf = jnp.einsum("bsh,dh->bsd", x_bf, w_bf) + bias
    assert jnp.allclose(out, ref_bf, atol=2e-3, rtol=2e-3)
    assert jnp.allclose(out_tiled, ref_bf, atol=2e-3, rtol=2e-3)

    # Full f32 reference (F.linear semantics) within bf16 rounding error.
    ref_f32 = jnp.einsum("bsh,dh->bsd", data, weight) + bias
    assert jnp.allclose(out, ref_f32, atol=5e-2, rtol=5e-2)

    print("KERNEL_OK")
</pallas_src>

<mosaic_0001>
module attributes {stable_mosaic.version = 11 : i64} {
  func.func @_linear_resident_kernel(%arg0: i32, %arg1: memref<8x32xf32, #tpu.memory_space<vmem>>, %arg2: memref<32x128xbf16, #tpu.memory_space<vmem>>, %arg3: memref<1x128xf32, #tpu.memory_space<vmem>>, %arg4: memref<8x128xf32, #tpu.memory_space<vmem>>) attributes {dimension_semantics = [#tpu.dimension_semantics<parallel>], iteration_bounds = array<i64: 2>, scalar_prefetch = 0 : i64, scratch_operands = 0 : i64, tpu.core_type = #tpu.core_type<tc>, window_params = [{transform_indices = @transform_0, window_bounds = array<i64: 8, 32>}, {pipeline_mode = #tpu.pipeline_mode<synchronous>, transform_indices = @transform_1, window_bounds = array<i64: 32, 128>}, {pipeline_mode = #tpu.pipeline_mode<synchronous>, transform_indices = @transform_2, window_bounds = array<i64: 1, 128>}, {transform_indices = @transform_3, window_bounds = array<i64: 8, 128>}]} {
    %c0 = arith.constant 0 : index
    %c0_0 = arith.constant 0 : index
    %0 = vector.load %arg1[%c0, %c0_0] : memref<8x32xf32, #tpu.memory_space<vmem>>, vector<8x32xf32>
    %1 = arith.truncf %0 : vector<8x32xf32> to vector<8x32xbf16>
    %c0_1 = arith.constant 0 : index
    %c0_2 = arith.constant 0 : index
    %2 = vector.load %arg2[%c0_1, %c0_2] : memref<32x128xbf16, #tpu.memory_space<vmem>>, vector<32x128xbf16>
    %cst = arith.constant dense<0.000000e+00> : vector<8x128xf32>
    %3 = tpu.matmul %1, %2, %cst {dimension_numbers = #tpu.dot_dimension_numbers<[1], [0], [0], [1], [0, 0, 1, 1], [], []>} : vector<8x32xbf16>, vector<32x128xbf16>, vector<8x128xf32> -> vector<8x128xf32>
    %c0_3 = arith.constant 0 : index
    %c0_4 = arith.constant 0 : index
    %4 = vector.load %arg3[%c0_3, %c0_4] : memref<1x128xf32, #tpu.memory_space<vmem>>, vector<1x128xf32>
    %5 = vector.broadcast %4 : vector<1x128xf32> to vector<8x128xf32>
    %6 = arith.addf %3, %5 : vector<8x128xf32>
    %c0_5 = arith.constant 0 : index
    %c0_6 = arith.constant 0 : index
    %7 = vector.load %arg4[%c0_5, %c0_6] : memref<8x128xf32, #tpu.memory_space<vmem>>, vector<8x128xf32>
    tpu.vector_store %arg4[%c0_5, %c0_6], %6 {strides = array<i32>} : memref<8x128xf32, #tpu.memory_space<vmem>>, vector<8x128xf32>,
    return
  }
  func.func @transform_0(%arg0: i32) -> (i32, i32) {
    %c0_i32 = arith.constant 0 : i32
    %c0_i32_0 = arith.constant 0 : i32
    return %arg0, %c0_i32 : i32, i32
  }
  func.func @transform_1(%arg0: i32) -> (i32, i32) {
    %c0_i32 = arith.constant 0 : i32
    %c0_i32_0 = arith.constant 0 : i32
    %c0_i32_1 = arith.constant 0 : i32
    return %c0_i32, %c0_i32_0 : i32, i32
  }
  func.func @transform_2(%arg0: i32) -> (i32, i32) {
    %c0_i32 = arith.constant 0 : i32
    %c0_i32_0 = arith.constant 0 : i32
    %c0_i32_1 = arith.constant 0 : i32
    return %c0_i32, %c0_i32_0 : i32, i32
  }
  func.func @transform_3(%arg0: i32) -> (i32, i32) {
    %c0_i32 = arith.constant 0 : i32
    %c0_i32_0 = arith.constant 0 : i32
    return %arg0, %c0_i32 : i32, i32
  }
}

</mosaic_0001>

<llo_original>
// kernel: decoder_forward.1
$region0: #{decoder_forward.1}
  #allocation0 [shape = 'u32[]', space=smem, size = 0x4, offset = 0x4, fixed_abs, tag = 'smem constant byte address 0x4 - core index']
  #allocation1 [shape = 'u32[72,128]{1,0:T(1,128)}', space=vmem, size = 0x9000, scoped, tag = 'internal scratch']
  %s0 = inlined_call_operand.hbm [shape: f32[16,32], index: 0, kind: input, shape index: {}]
  %s1 = inlined_call_operand.hbm [shape: bf16[32,128], index: 1, kind: input, shape index: {}]
  %s2 = inlined_call_operand.vmem [shape: f32[1,128], index: 2, kind: input, shape index: {}]
  %s3 = inlined_call_operand.vmem [shape: f32[16,128], index: 3, kind: output, shape index: {}]
  %s4 = sld [smem:[#allocation0]]
  $region53: #{decoder_forward.1} parent=0
    _
  %s6 = ssub.s32 1, %s4
  %s7 = scalar_select 0, %s6, %s4
  $region1: #{decoder_forward.1} parent=0
    #allocation2 [shape = 'u8[8192]{0}', space=vmem, size = 0x2000, scoped, tag = 'input window, operand 0']
    #allocation3 [shape = 's32[2]{0}', space=sflag, size = 0x8, scoped, tag = 'scoped memory for decoder_forward.1']
    #allocation4 [shape = 'u8[8192]{0}', space=vmem, size = 0x2000, scoped, tag = 'input window, operand 1, single buffered']
    #allocation5 [shape = 's32[1]{0}', space=sflag, size = 0x4, scoped, tag = 'scoped memory for decoder_forward.1']
    %8 = vsyncpa [#allocation3], 0
    %s9 = scalar_lea.sflag [#allocation3], 1
    %10 = vsyncpa %s9, 0
    %11 = vsyncpa [#allocation5], 0
    loop: start=0, step=1, limit=4
    $region2: #{decoder_forward.1} parent=1 // loop_pre_header
      _
    $region3: #{decoder_forward.1} parent=1 // loop_header
      %s13 = sphi 0, %s17
      %p14 = scmp.ge.s32.totalorder %s13, 4
      %s23 = sphi 0, %s25
      %s26 = sphi 0, %s23
      %s27 = sphi 0, %s26
      %s43 = sphi 0, %s27
      %s47 = sphi 0, %s47
      %s49 = sphi 0, %s47
      %s50 = sphi 0, %s49
      %s64 = sphi 0, %s50
      %s68 = sphi 0, %s68
      %s70 = sphi 0, %s68
      %s71 = sphi 0, %s70
      %s85 = sphi 0, %s71
      %s91 = sphi 0, %s93
      %s94 = sphi 0, %s91
      %s95 = sphi 0, %s94
      %s111 = sphi 0, %s95
    $region4: #{decoder_forward.1} parent=1 // loop_header_branch
      %16 = sbr.rel (%p14) target = $region8
    $region5: #{decoder_forward.1} parent=1 // loop_body
      %s18 = ssub.s32 %s13, 1
      %s19 = ssub.s32 %s13, 2
      %s20 = sadd.s32 %s13, 1
      %s21 = ssub.s32 %s13, %s20
      %p22 = scmp.eq.s32.totalorder %s21, 0
      %s24 = sadd.s32 %s23, 1
      %s25 = scalar_select %p22, %s23, %s24
      %p28 = pneg %p22
      %p29 = scmp.eq.s32.totalorder %s13, 1
      %p30 = por %p28, %p29
      %p31 = scmp.ne.s32.totalorder %s23, %s26
      %p32 = scmp.eq.s32.totalorder %s13, 0
      %p33 = por %p31, %p32
      %p34 = scmp.ne.s32.totalorder %s23, %s26
      %p35 = scmp.eq.s32.totalorder %s18, 1
      %p36 = por %p34, %p35
      %p37 = scmp.ne.s32.totalorder %s26, %s27
      %p38 = scmp.eq.s32.totalorder %s18, 0
      %p39 = por %p37, %p38
      %p40 = scmp.ne.s32.totalorder %s26, %s27
      %p41 = scmp.eq.s32.totalorder %s19, 1
      %p42 = por %p40, %p41
      %p44 = scmp.ne.s32.totalorder %s27, %s43
      %p45 = scmp.eq.s32.totalorder %s19, 0
      %p46 = por %p44, %p45
      %s48 = sadd.s32 %s47, 1
      %p51 = scmp.eq.s32.totalorder %s13, 1
      %p52 = scmp.ne.s32.totalorder %s47, %s49
      %p53 = scmp.eq.s32.totalorder %s13, 0
      %p54 = por %p52, %p53
      %p55 = scmp.ne.s32.totalorder %s47, %s49
      %p56 = scmp.eq.s32.totalorder %s18, 1
      %p57 = por %p55, %p56
      %p58 = scmp.ne.s32.totalorder %s49, %s50
      %p59 = scmp.eq.s32.totalorder %s18, 0
      %p60 = por %p58, %p59
      %p61 = scmp.ne.s32.totalorder %s49, %s50
      %p62 = scmp.eq.s32.totalorder %s19, 1
      %p63 = por %p61, %p62
      %p65 = scmp.ne.s32.totalorder %s50, %s64
      %p66 = scmp.eq.s32.totalorder %s19, 0
      %p67 = por %p65, %p66
      %s69 = sadd.s32 %s68, 1
      %p72 = scmp.eq.s32.totalorder %s13, 1
      %p73 = scmp.ne.s32.totalorder %s68, %s70
      %p74 = scmp.eq.s32.totalorder %s13, 0
      %p75 = por %p73, %p74
      %p76 = scmp.ne.s32.totalorder %s68, %s70
      %p77 = scmp.eq.s32.totalorder %s18, 1
      %p78 = por %p76, %p77
      %p79 = scmp.ne.s32.totalorder %s70, %s71
      %p80 = scmp.eq.s32.totalorder %s18, 0
      %p81 = por %p79, %p80
      %p82 = scmp.ne.s32.totalorder %s70, %s71
      %p83 = scmp.eq.s32.totalorder %s19, 1
      %p84 = por %p82, %p83
      %p86 = scmp.ne.s32.totalorder %s71, %s85
      %p87 = scmp.eq.s32.totalorder %s19, 0
      %p88 = por %p86, %p87
      %s89 = ssub.s32 %s13, %s20
      %p90 = scmp.eq.s32.totalorder %s89, 0
      %s92 = sadd.s32 %s91, 1
      %s93 = scalar_select %p90, %s91, %s92
      %p96 = pneg %p90
      %p97 = scmp.eq.s32.totalorder %s13, 1
      %p98 = por %p96, %p97
      %p99 = scmp.ne.s32.totalorder %s91, %s94
      %p100 = scmp.eq.s32.totalorder %s13, 0
      %p101 = por %p99, %p100
      %p102 = scmp.ne.s32.totalorder %s91, %s94
      %p103 = scmp.eq.s32.totalorder %s18, 1
      %p104 = por %p102, %p103
      %p105 = scmp.ne.s32.totalorder %s94, %s95
      %p106 = scmp.eq.s32.totalorder %s18, 0
      %p107 = por %p105, %p106
      %p108 = scmp.ne.s32.totalorder %s94, %s95
      %p109 = scmp.eq.s32.totalorder %s19, 1
      %p110 = por %p108, %p109
      %p112 = scmp.ne.s32.totalorder %s95, %s111
      %p113 = scmp.eq.s32.totalorder %s19, 0
      %p114 = por %p112, %p113
      %p115 = scmp.le.s32.totalorder 1, %s13
      %p116 = scmp.lt.s32.totalorder %s13, 3
      %p117 = pnand %p115, %p116
      %p118 = pneg %p117
      // Predicated region
      $region9: #{decoder_forward.1} parent=5 // pred_check
        _
      $region10: #{decoder_forward.1} parent=5 // pred_check_branch
        %120 = sbr.rel (%p117) target = $region12
      $region11: #{decoder_forward.1} parent=5 // pred_region
        %s121 = ssub.s32 %s13, 1
        // Predicated region
        $region13: #{decoder_forward.1} parent=11 // pred_check
          %p122 = pneg %p60
        $region14: #{decoder_forward.1} parent=11 // pred_check_branch
          %124 = sbr.rel (%p122) target = $region16
        $region15: #{decoder_forward.1} parent=11 // pred_region
          %126 = vsyncadd [#allocation5], 0
          %s127 = sshll.u32 %s1, 4
          %s128 = int_to_ptr.hbm [resolvable:$true] %s127
          %s129 = sshll.u32 [#allocation4], 4
          %s130 = int_to_ptr.vmem [resolvable:$true] %s129
          %135 = dma.hbm_to_vmem [thread:$0]  %s128, 256, %s130, [#allocation5], 64, 64, 4
        $region16: #{decoder_forward.1} parent=11 // pred_fallthru
          _
        // Predicated region
        $region17: #{decoder_forward.1} parent=11 // pred_check
          %p136 = pneg %p81
        $region18: #{decoder_forward.1} parent=11 // pred_check_branch
          %138 = sbr.rel (%p136) target = $region20
        $region19: #{decoder_forward.1} parent=11 // pred_region
          _
        $region20: #{decoder_forward.1} parent=11 // pred_fallthru
          _
      $region12: #{decoder_forward.1} parent=5 // pred_fallthru
        _
      %p139 = scmp.lt.s32.totalorder %s13, 2
      // Predicated region
      $region21: #{decoder_forward.1} parent=5 // pred_check
        %p140 = pneg %p139
      $region22: #{decoder_forward.1} parent=5 // pred_check_branch
        %142 = sbr.rel (%p140) target = $region24
      $region23: #{decoder_forward.1} parent=5 // pred_region
        // Predicated region
        $region25: #{decoder_forward.1} parent=23 // pred_check
          %p143 = pneg %p33
        $region26: #{decoder_forward.1} parent=23 // pred_check_branch
          %145 = sbr.rel (%p143) target = $region28
        $region27: #{decoder_forward.1} parent=23 // pred_region
          %s146 = sand.u32 %s23, 1
          %s147 = scalar_lea.sflag [#allocation3], %s146
          %s148 = sand.u32 %s23, 1
          %s149 = smul.addr %s148, 8
          %s150 = scalar_lea.vmem [#allocation2], %s149
          %152 = vsyncadd %s147, 0
          %s153 = smul.addr %s13, 8
          %s154 = scalar_lea.hbm %s0, %s153
          %s156 = sshll.u32 %s154, 4
          %s157 = int_to_ptr.hbm [resolvable:$true] %s156
          %s158 = sshll.u32 %s150, 4
          %s159 = int_to_ptr.vmem [resolvable:$true] %s158
          %161 = dma.hbm_to_vmem [thread:$0]  %s157, 128, %s159, %s147
        $region28: #{decoder_forward.1} parent=23 // pred_fallthru
          _
      $region24: #{decoder_forward.1} parent=5 // pred_fallthru
        _
      %p162 = scmp.le.s32.totalorder 1, %s13
      %p163 = scmp.lt.s32.totalorder %s13, 3
      %p164 = pnand %p162, %p163
      %p165 = pneg %p164
      // Predicated region
      $region29: #{decoder_forward.1} parent=5 // pred_check
        _
      $region30: #{decoder_forward.1} parent=5 // pred_check_branch
        %167 = sbr.rel (%p164) target = $region32
      $region31: #{decoder_forward.1} parent=5 // pred_region
        %s168 = ssub.s32 %s13, 1
        %s169 = sand.u32 %s26, 1
        %s170 = scalar_lea.sflag [#allocation3], %s169
        %s171 = sand.u32 %s26, 1
        %s172 = smul.addr %s171, 8
        %s173 = scalar_lea.vmem [#allocation2], %s172
        // Predicated region
        $region33: #{decoder_forward.1} parent=31 // pred_check
          %p174 = pneg %p39
        $region34: #{decoder_forward.1} parent=31 // pred_check_branch
          %176 = sbr.rel (%p174) target = $region36
        $region35: #{decoder_forward.1} parent=31 // pred_region
          %178 = dma.done %s170, 128
        $region36: #{decoder_forward.1} parent=31 // pred_fallthru
          _
        // Predicated region
        $region37: #{decoder_forward.1} parent=31 // pred_check
          %p179 = pneg %p60
        $region38: #{decoder_forward.1} parent=31 // pred_check_branch
          %181 = sbr.rel (%p179) target = $region40
        $region39: #{decoder_forward.1} parent=31 // pred_region
          %183 = dma.done [#allocation5], 256
        $region40: #{decoder_forward.1} parent=31 // pred_fallthru
          _
        %s184 = sand.u32 %s26, 1
        %s185 = scalar_lea.sflag [#allocation3], %s184
        %s186 = sand.u32 %s26, 1
        %s187 = smul.addr %s186, 8
        %s188 = scalar_lea.vmem [#allocation2], %s187
        %p189 = pneg %p39
        %p190 = pneg %p36
        %p191 = pneg %p60
        %p192 = pneg %p57
        %p193 = pneg %p81
        %p194 = pneg %p78
        %p195 = pneg %p107
        %p196 = pneg %p104
        %p197 = scmp.lt.s32.totalorder %s18, 1
        %s198 = scalar_select %p197, %s18, 1
        %s199 = smul.addr %s198, 8
        %s200 = scalar_lea.vmem %s3, %s199
        %p201 = scmp.lt.s32.totalorder %s18, 1
        %s202 = scalar_select %p201, %s18, 1
        %s203 = smul.addr %s202, 8
        %s204 = scalar_lea.vmem %s3, %s203
        %v206 = vld [vmem:[%s173] sm:$0xff]
        %v207 = vpack.c.bf16 %v206, %v206
        %v208 = vld [vmem:[#allocation4] sm:$0xf]
        %v209 = vld [vmem:[#allocation4 + $0x4] sm:$0xf]
        %v210 = vld [vmem:[#allocation4 + $0x8] sm:$0xf]
        %v211 = vld [vmem:[#allocation4 + $0xc] sm:$0xf]
        %v212 = vld [vmem:[%s2] sm:$0x1]
        %v214 = vperm.slane %v212, 0
        %v220 = vunpack.c.l.b16 %v208
        %v221 = vunpack.c.l.b16 %v209
        %v222 = vunpack.c.l.b16 %v210
        %v223 = vunpack.c.l.b16 %v211
        %v224 = vpack.c.b16 %v221, %v220
        %v225 = vpack.c.b16 %v223, %v222
        %vm228 = vcmask 261120
        %v230 = vsel %vm228, %v207, 0
        %232 = vmatpush.bf16.msra.mxu0 0
        %233 = vmatpush.bf16.msra.mxu0 0
        %234 = vmatpush.bf16.msra.mxu0 0
        %235 = vmatpush.bf16.msra.mxu0 0
        %236 = vmatpush.bf16.msra.mxu0 0
        %237 = vmatpush.bf16.msra.mxu0 0
        %238 = vmatpush.bf16.msra.mxu0 %v225
        %239 = vmatpush.bf16.msra.mxu0 %v224
        %240 = vmatmul.bf16.gmra.mxu0 %v230
        %v241 = vpop.f32.mrf.mxu0
        %v242 = vadd.f32 %v214, %v241
        %v243 = vpop.f32.mrf.mxu0
        %244 = vdwg.mxu0
        %245 = vst [vmem:[%s204] sm:$0xff] %v242
        %p246 = scmp.lt.s32.totalorder %s18, 1
        %s247 = scalar_select %p246, %s18, 1
        %s248 = smul.addr %s247, 8
        %s249 = scalar_lea.vmem %s3, %s248
        // Predicated region
        $region41: #{decoder_forward.1} parent=31 // pred_check
          %p250 = pneg %p104
        $region42: #{decoder_forward.1} parent=31 // pred_check_branch
          %252 = sbr.rel (%p250) target = $region44
        $region43: #{decoder_forward.1} parent=31 // pred_region
          _
        $region44: #{decoder_forward.1} parent=31 // pred_fallthru
          _
      $region32: #{decoder_forward.1} parent=5 // pred_fallthru
        _
      %p253 = scmp.le.s32.totalorder 2, %s13
      // Predicated region
      $region45: #{decoder_forward.1} parent=5 // pred_check
        %p254 = pneg %p253
      $region46: #{decoder_forward.1} parent=5 // pred_check_branch
        %256 = sbr.rel (%p254) target = $region48
      $region47: #{decoder_forward.1} parent=5 // pred_region
        %s257 = ssub.s32 %s13, 2
        // Predicated region
        $region49: #{decoder_forward.1} parent=47 // pred_check
          %p258 = pneg %p110
        $region50: #{decoder_forward.1} parent=47 // pred_check_branch
          %260 = sbr.rel (%p258) target = $region52
        $region51: #{decoder_forward.1} parent=47 // pred_region
          %p261 = scmp.lt.s32.totalorder %s19, 1
          %s262 = scalar_select %p261, %s19, 1
          %s263 = smul.addr %s262, 8
          %s264 = scalar_lea.vmem %s3, %s263
        $region52: #{decoder_forward.1} parent=47 // pred_fallthru
          _
      $region48: #{decoder_forward.1} parent=5 // pred_fallthru
        _
    $region6: #{decoder_forward.1} parent=1 // loop_footer
      %s17 = sadd.s32 1, %s13
    $region7: #{decoder_forward.1} parent=1 // loop_footer_branch
      %12 = sbr.rel target = $region3
    $region8: #{decoder_forward.1} parent=1 // loop_exit
      _
    %265 = vsyncpa [#allocation3], 1
    %s266 = scalar_lea.sflag [#allocation3], 1
    %267 = vsyncpa %s266, 1
    %268 = vsyncpa [#allocation5], 1

</llo_original>
